<compile_context>
chip_gen: v7x
topology: tpu7x:2x2x1
jax: 0.10.0
libtpu: 0.0.40
codegen_flags: <defaults>
</compile_context>

<pallas_src>
import math

import jax
import jax.numpy as jnp
from jax.experimental import pallas as pl
from jax.experimental.pallas import tpu as pltpu

# Constant from the module's __init__ (log_scale = log(273.15)); forward uses
# exp(-log_scale).  Baked in deterministically — no checkpoint involved.
_LOG_SCALE = math.log(273.15)
_FWD_SCALE = math.exp(-_LOG_SCALE)

_MAX_COLS = 8192               # lane-dense slab width cap (multiple of 128)
_MEGACORE_MIN_BYTES = 2 << 20  # above this, force >= 2 grid steps (v7x 2 TCs)
_SAFE_TILE_BYTES = 2 << 20     # fallback per-block budget, safe on every chip


def _scale_kernel(x_ref, o_ref):
    x = x_ref[...]
    if jnp.dtype(x_ref.dtype).itemsize < 4:
        # bf16 / fp8 storage: multiply in f32 (matches a module whose scale
        # lives in higher precision), then cast back.  Free on the VPU —
        # this kernel is HBM-bound.
        o_ref[...] = (x.astype(jnp.float32) * jnp.float32(_FWD_SCALE)).astype(o_ref.dtype)
    else:
        o_ref[...] = x * jnp.asarray(_FWD_SCALE, dtype=x_ref.dtype)


def _tile_budget_bytes() -> int:
    """Generation-aware per-block byte budget (input tile; output tile matches)."""
    try:
        info = pltpu.get_tpu_info()
    except Exception:
        return _SAFE_TILE_BYTES
    text = ""
    for attr in ("chip_version", "version", "chip_name", "name"):
        val = getattr(info, attr, None)
        if val is not None:
            text += " " + str(val).lower()
    if "v7" in text:
        return 8 << 20   # 3.2 TB/s HBM: big tiles cut per-step overhead to ~4%
    if "v6" in text:
        return 6 << 20   # ~1.4 TB/s HBM: just past the measured roofline knee
    if "v5" in text:
        return _SAFE_TILE_BYTES  # ~820 GB/s: 2 MiB tiles already <8% overhead
    cap = getattr(info, "vmem_capacity_bytes", None)
    if isinstance(cap, int) and cap > 0:
        # 64 MiB per-TC VMEM => v7x-class (fast HBM); 128 MiB => v5e/v6e class.
        return (8 << 20) if cap <= (80 << 20) else (4 << 20)
    return _SAFE_TILE_BYTES


def _sublane_multiple(dtype) -> int:
    return {4: 8, 2: 16, 1: 32}.get(jnp.dtype(dtype).itemsize, 8)


def _round_up(v: int, m: int) -> int:
    return -(-v // m) * m


def _choose_2d_view(shape, total: int):
    """Pick a zero-copy (rows, cols) reshape of the input.

    Main path: cols is a large multiple of 128 dividing `total` (lane-dense,
    unmasked stores).  Fallback for awkward element counts: cols = original
    last dim — a full-extent trailing block dim is always legal — so there is
    no jnp.pad / slice and no extra HBM pass.
    """
    if total % 128 == 0:
        for c in range(_MAX_COLS, 127, -128):
            if total % c == 0:
                return total // c, c
    cols = shape[-1] if len(shape) >= 1 else 1
    cols = max(int(cols), 1)
    return total // cols, cols


def invertible_norm_forward(x: jax.Array, *, donate: bool = False) -> jax.Array:
    """Forward pass of InvertibleNorm: x * exp(-log(273.15)).

    Shape/dtype preserving.  `donate=True` aliases the output onto the input
    buffer (only if x is dead after this call); note aliasing saves an
    allocation, not HBM traffic.
    """
    orig_shape = x.shape
    dtype = x.dtype
    itemsize = jnp.dtype(dtype).itemsize

    total = 1
    for d in orig_shape:
        total *= int(d)
    if total == 0:
        return x

    rows, cols = _choose_2d_view(orig_shape, total)
    x2d = x.reshape(rows, cols)  # zero-copy on both paths

    sub = _sublane_multiple(dtype)
    tile_budget = _tile_budget_bytes()
    row_bytes = cols * itemsize

    # Largest sublane-aligned row count under the per-block budget, or the
    # whole array if it is smaller than one block.
    max_block_rows = max(sub, (tile_budget // max(row_bytes, 1)) // sub * sub)
    block_rows = rows if rows <= max_block_rows else max_block_rows

    # Megacore (v7x has 2 TensorCores): medium+ tensors must produce at least
    # 2 grid steps so dimension_semantics=("parallel",) has work to shard.
    total_bytes = total * itemsize
    if total_bytes >= _MEGACORE_MIN_BYTES and rows >= 2 * sub:
        half_rows = _round_up(_round_up(rows, 2) // 2, sub)
        block_rows = min(block_rows, half_rows)

    # If block_rows is not the full row extent it must be sublane aligned; a
    # ragged last grid step is handled by Pallas automatically.
    if block_rows != rows:
        block_rows = max(sub, (block_rows // sub) * sub)

    block_bytes = block_rows * cols * itemsize
    if block_bytes > (64 << 20):
        # Degenerate case (enormous, non-128-divisible trailing dim): a single
        # block row would not fit VMEM; let XLA emit the fused multiply.
        return x * jnp.asarray(_FWD_SCALE, dtype=dtype)

    grid = (pl.cdiv(rows, block_rows),)
    # in + out, double-buffered, plus headroom — set explicitly so the larger
    # v6e/v7x tiles are never rejected by the scoped-VMEM default.
    vmem_limit = 4 * block_bytes + (8 << 20)

    out2d = pl.pallas_call(
        _scale_kernel,
        out_shape=jax.ShapeDtypeStruct((rows, cols), dtype),
        grid_spec=pltpu.PrefetchScalarGridSpec(
            num_scalar_prefetch=0,
            grid=grid,
            in_specs=[pl.BlockSpec((block_rows, cols), lambda i: (i, 0))],
            out_specs=pl.BlockSpec((block_rows, cols), lambda i: (i, 0)),
        ),
        compiler_params=pltpu.CompilerParams(
            dimension_semantics=("parallel",),
            vmem_limit_bytes=vmem_limit,
        ),
        cost_estimate=pl.CostEstimate(
            flops=total,
            transcendentals=0,
            bytes_accessed=2 * total * itemsize,
        ),
        input_output_aliases=({0: 0} if donate else {}),
    )(x2d)

    return out2d.reshape(orig_shape)


if __name__ == "__main__":
    key = jax.random.PRNGKey(0)
    scale = math.exp(-math.log(273.15))

    # Primary: small NCHW input consistent with the module
    # (batch=2, channels=4, spatial=16x16) -> single lane-dense (1, 2048) block.
    x = jax.random.normal(key, (2, 4, 16, 16), dtype=jnp.float32)
    out = jax.block_until_ready(invertible_norm_forward(x))
    assert out.shape == x.shape and out.dtype == x.dtype
    assert jnp.allclose(out, x * scale, atol=1e-6, rtol=1e-6)

    # Other code paths, still at small shapes:
    #   (1, 3, 5, 7)     -> awkward count: zero-copy full-extent-block fallback.
    #   (2, 8, 32, 128)  -> 128-multiple count, single lane-dense block.
    #   (8, 16, 64, 128) -> 4 MiB tensor: >= 2 grid steps (megacore split).
    for shape in [(1, 3, 5, 7), (2, 8, 32, 128), (8, 16, 64, 128)]:
        key, subkey = jax.random.split(key)
        xi = jax.random.normal(subkey, shape, dtype=jnp.float32)
        oi = jax.block_until_ready(invertible_norm_forward(xi))
        assert oi.shape == xi.shape and oi.dtype == xi.dtype
        assert jnp.allclose(oi, xi * scale, atol=1e-6, rtol=1e-6)

    # bf16 storage path (multiply performed in f32, cast back).
    key, subkey = jax.random.split(key)
    xb = jax.random.normal(subkey, (2, 4, 16, 16), dtype=jnp.bfloat16)
    ob = jax.block_until_ready(invertible_norm_forward(xb))
    assert ob.shape == xb.shape and ob.dtype == xb.dtype
    assert jnp.allclose(ob.astype(jnp.float32),
                        xb.astype(jnp.float32) * scale, atol=1e-2, rtol=1e-2)

    print("KERNEL_OK")
</pallas_src>

<mosaic_0001>
module attributes {stable_mosaic.version = 11 : i64} {
  func.func @_scale_kernel(%arg0: i32, %arg1: memref<1x2048xf32, #tpu.memory_space<vmem>>, %arg2: memref<1x2048xf32, #tpu.memory_space<vmem>>) attributes {dimension_semantics = [#tpu.dimension_semantics<parallel>], iteration_bounds = array<i64: 1>, scalar_prefetch = 0 : i64, scratch_operands = 0 : i64, tpu.core_type = #tpu.core_type<tc>, window_params = [{transform_indices = @transform_0, window_bounds = array<i64: 1, 2048>}, {transform_indices = @transform_1, window_bounds = array<i64: 1, 2048>}]} {
    %c0 = arith.constant 0 : index
    %c0_0 = arith.constant 0 : index
    %0 = vector.load %arg1[%c0, %c0_0] : memref<1x2048xf32, #tpu.memory_space<vmem>>, vector<1x2048xf32>
    %cst = arith.constant 0.00366099202 : f32
    %1 = vector.broadcast %cst : f32 to vector<1x2048xf32>
    %2 = arith.mulf %0, %1 : vector<1x2048xf32>
    %c0_1 = arith.constant 0 : index
    %c0_2 = arith.constant 0 : index
    %3 = vector.load %arg2[%c0_1, %c0_2] : memref<1x2048xf32, #tpu.memory_space<vmem>>, vector<1x2048xf32>
    tpu.vector_store %arg2[%c0_1, %c0_2], %2 {strides = array<i32>} : memref<1x2048xf32, #tpu.memory_space<vmem>>, vector<1x2048xf32>,
    return
  }
  func.func @transform_0(%arg0: i32) -> (i32, i32) {
    %c0_i32 = arith.constant 0 : i32
    %c0_i32_0 = arith.constant 0 : i32
    return %arg0, %c0_i32 : i32, i32
  }
  func.func @transform_1(%arg0: i32) -> (i32, i32) {
    %c0_i32 = arith.constant 0 : i32
    %c0_i32_0 = arith.constant 0 : i32
    return %arg0, %c0_i32 : i32, i32
  }
}

</mosaic_0001>

<llo_original>
// kernel: tpu_custom_call.1
$region0: #{tpu_custom_call.1}
  #allocation0 [shape = 'u32[]', space=smem, size = 0x4, offset = 0x4, fixed_abs, tag = 'smem constant byte address 0x4 - core index']
  #allocation1 [shape = 'u32[144,128]{1,0:T(1,128)}', space=vmem, size = 0x12000, scoped, tag = 'internal scratch']
  %s0 = inlined_call_operand.hbm [shape: f32[1,2048], index: 0, kind: input, shape index: {}]
  %s1 = inlined_call_operand.hbm [shape: f32[1,2048], index: 1, kind: output, shape index: {}]
  %s2 = sld [smem:[#allocation0]]
  $region18: #{tpu_custom_call.1} parent=0
    _
  %s4 = ssub.s32 1, %s2
  %s5 = scalar_select 0, %s4, %s2
  $region1: #{tpu_custom_call.1} parent=0
    #allocation2 [shape = 'u8[8192]{0}', space=vmem, size = 0x2000, scoped, tag = 'input window, operand 0, single buffered']
    #allocation3 [shape = 's32[1]{0}', space=sflag, size = 0x4, scoped, tag = 'scoped memory for tpu_custom_call.1']
    #allocation4 [shape = 's32[1]{0}', space=sflag, size = 0x4, scoped, tag = 'scoped memory for tpu_custom_call.1']
    #allocation5 [shape = 'u8[8192]{0}', space=vmem, size = 0x2000, scoped, tag = 'output window, operand 0, single buffered']
    %6 = vsyncpa [#allocation3], 0
    %7 = vsyncpa [#allocation4], 0
    // Predicated region
    $region2: #{tpu_custom_call.1} parent=1 // pred_check
      _
    $region3: #{tpu_custom_call.1} parent=1 // pred_check_branch
      %9 = sbr.rel (0) target = $region5
    $region4: #{tpu_custom_call.1} parent=1 // pred_region
      %s11 = ssub.s32 256, 256
      %12 = vsyncadd [#allocation3], %s11
      %s14 = sshll.u32 [#allocation2], 4
      %s15 = int_to_ptr.vmem [resolvable:$true] %s14
      %17 = dma.hbm_to_vmem [thread:$0]  %s0, 256, %s15, [#allocation3]
    $region5: #{tpu_custom_call.1} parent=1 // pred_fallthru
      _
    // Predicated region
    $region6: #{tpu_custom_call.1} parent=1 // pred_check
      _
    $region7: #{tpu_custom_call.1} parent=1 // pred_check_branch
      %19 = sbr.rel (0) target = $region9
    $region8: #{tpu_custom_call.1} parent=1 // pred_region
      %20 = dma.done [#allocation3], 256
    $region9: #{tpu_custom_call.1} parent=1 // pred_fallthru
      _
    %v21 = vld [vmem:[#allocation2] sm:$0xff]
    %v22 = vld [vmem:[#allocation2 + $0x8] sm:$0xff]
    %v23 = vmul.f32 %v21, 0.003660992
    %v24 = vmul.f32 %v22, 0.003660992
    %25 = vst [vmem:[#allocation5] sm:$0xff] %v23
    %26 = vst [vmem:[#allocation5 + $0x8] sm:$0xff] %v24
    // Predicated region
    $region10: #{tpu_custom_call.1} parent=1 // pred_check
      _
    $region11: #{tpu_custom_call.1} parent=1 // pred_check_branch
      %28 = sbr.rel (0) target = $region13
    $region12: #{tpu_custom_call.1} parent=1 // pred_region
      %s30 = ssub.s32 256, 256
      %31 = vsyncadd [#allocation4], %s30
      %s33 = sshll.u32 [#allocation5], 4
      %s34 = int_to_ptr.vmem [resolvable:$true] %s33
      %36 = dma.vmem_to_hbm [thread:$0]  %s34, 256, %s1, [#allocation4]
    $region13: #{tpu_custom_call.1} parent=1 // pred_fallthru
      _
    // Predicated region
    $region14: #{tpu_custom_call.1} parent=1 // pred_check
      _
    $region15: #{tpu_custom_call.1} parent=1 // pred_check_branch
      %38 = sbr.rel (0) target = $region17
    $region16: #{tpu_custom_call.1} parent=1 // pred_region
      %39 = dma.done [#allocation4], 256
    $region17: #{tpu_custom_call.1} parent=1 // pred_fallthru
      _
    %40 = vsyncpa [#allocation3], 1
    %41 = vsyncpa [#allocation4], 1

</llo_original>
